<compile_context>
chip_gen: v7x
topology: tpu7x:2x2x1
jax: 0.10.0
libtpu: 0.0.40
codegen_flags: <defaults>
</compile_context>

<pallas_src>
import jax
import jax.numpy as jnp
from jax.experimental import pallas as pl
from jax.experimental.pallas import tpu as pltpu

_LANES = 128
# 1024 x 128 f32 = 512 KiB per input per buffer -> 2 MiB total with default
# double buffering: well inside scoped-VMEM defaults on v5e/v6e/v7x, and large
# enough to amortize per-grid-step overhead.  Also a multiple of 16 so the
# same block shape is legal for bf16 inputs.
_MAX_TILE_ROWS = 1024


def _make_l1_partial_kernel(tile_rows, total_rows, needs_mask):
    """Kernel computing one partial sum(|x - t|) per grid step."""

    def kernel(x_ref, t_ref, out_ref):
        x = x_ref[...]
        t = t_ref[...]
        # Accumulate in f32 regardless of input dtype; skip no-op casts.
        if x.dtype != jnp.float32:
            x = x.astype(jnp.float32)
        if t.dtype != jnp.float32:
            t = t.astype(jnp.float32)
        ad = jnp.abs(x - t)
        if needs_mask:
            # Last block may extend past the array; zero out invalid rows.
            row0 = pl.program_id(0) * tile_rows
            rid = row0 + jax.lax.broadcasted_iota(jnp.int32, ad.shape, 0)
            ad = jnp.where(rid < total_rows, ad, 0.0)
        # One cross-lane reduce per (large) tile; each grid step owns its own
        # output scalar -> no serial accumulator chain, grid can be parallel.
        out_ref[0, 0] = jnp.sum(ad)

    return kernel


def _l1_sum_2d(x2, t2):
    """sum(|x2 - t2|) over a lane-dense (rows, 128) slab via Pallas."""
    rows = x2.shape[0]
    # If rows < _MAX_TILE_ROWS, use the full extent (always a legal block
    # shape); otherwise use a 1024-row tile (multiple of 8 and 16).
    tile_rows = min(_MAX_TILE_ROWS, rows)
    num_tiles = -(-rows // tile_rows)
    needs_mask = (rows % tile_rows) != 0
    kernel = _make_l1_partial_kernel(tile_rows, rows, needs_mask)

    partials = pl.pallas_call(
        kernel,
        out_shape=jax.ShapeDtypeStruct((num_tiles, 1), jnp.float32),
        grid=(num_tiles,),
        in_specs=[
            pl.BlockSpec((tile_rows, _LANES), lambda i: (i, 0)),
            pl.BlockSpec((tile_rows, _LANES), lambda i: (i, 0)),
        ],
        # One (1,1) SMEM scalar per grid step (per-block partial sums).
        out_specs=pl.BlockSpec((1, 1), lambda i: (i, 0),
                               memory_space=pltpu.SMEM),
        compiler_params=pltpu.CompilerParams(
            dimension_semantics=("parallel",)),
    )(x2, t2)
    return jnp.sum(partials)


def pallas_loss(inp, target, size_average=True):
    """L1 reduction loss matching `_Loss(size_average).forward(input, target)`."""
    assert inp.shape == target.shape, "input/target shapes must match"
    n_elem = inp.size

    flat_x = inp.reshape(-1)
    flat_t = target.reshape(-1)

    rows = n_elem // _LANES
    k = rows * _LANES

    total = jnp.float32(0.0)
    if rows > 0:
        x2 = flat_x[:k].reshape(rows, _LANES)
        t2 = flat_t[:k].reshape(rows, _LANES)
        total = total + _l1_sum_2d(x2, t2)
    if k < n_elem:
        # Tiny (<128-element) ragged tail handled in plain JAX — avoids
        # materializing a padded copy of the full tensors in HBM.
        tail = (flat_x[k:].astype(jnp.float32)
                - flat_t[k:].astype(jnp.float32))
        total = total + jnp.sum(jnp.abs(tail))

    if size_average:
        total = total / jnp.float32(n_elem)
    return total


if __name__ == "__main__":
    key = jax.random.PRNGKey(0)
    k_in, k_tgt, k_in2, k_tgt2, k_in3, k_tgt3 = jax.random.split(key, 6)

    # Small NCHW shapes consistent with a BEGAN discriminator output.
    x = jax.random.normal(k_in, (2, 4, 16, 16), dtype=jnp.float32)
    y = jax.random.normal(k_tgt, (2, 4, 16, 16), dtype=jnp.float32)

    loss_mean = pallas_loss(x, y, size_average=True)
    loss_sum = pallas_loss(x, y, size_average=False)
    jax.block_until_ready((loss_mean, loss_sum))

    ref_mean = jnp.mean(jnp.abs(x - y))
    ref_sum = jnp.sum(jnp.abs(x - y))
    assert jnp.allclose(loss_mean, ref_mean, rtol=1e-5, atol=1e-5)
    assert jnp.allclose(loss_sum, ref_sum, rtol=1e-5, atol=1e-4)

    # Exercise the multi-tile + masked-last-block path (rows > 1024, not a
    # multiple of the tile).
    x2 = jax.random.normal(k_in2, (2, 8, 100, 100), dtype=jnp.float32)
    y2 = jax.random.normal(k_tgt2, (2, 8, 100, 100), dtype=jnp.float32)
    loss2 = pallas_loss(x2, y2, size_average=True)
    jax.block_until_ready(loss2)
    ref2 = jnp.mean(jnp.abs(x2 - y2))
    assert jnp.allclose(loss2, ref2, rtol=1e-5, atol=1e-5)

    # Exercise the ragged-tail path (numel not a multiple of 128).
    x3 = jax.random.normal(k_in3, (3, 5, 7, 11), dtype=jnp.float32)
    y3 = jax.random.normal(k_tgt3, (3, 5, 7, 11), dtype=jnp.float32)
    loss3 = pallas_loss(x3, y3, size_average=False)
    jax.block_until_ready(loss3)
    ref3 = jnp.sum(jnp.abs(x3 - y3))
    assert jnp.allclose(loss3, ref3, rtol=1e-5, atol=1e-4)

    print("KERNEL_OK")
</pallas_src>

<mosaic_0001>
module attributes {stable_mosaic.version = 11 : i64} {
  func.func @kernel(%arg0: i32, %arg1: memref<16x128xf32, #tpu.memory_space<vmem>>, %arg2: memref<16x128xf32, #tpu.memory_space<vmem>>, %arg3: memref<1x1xf32, #tpu.memory_space<smem>>) attributes {dimension_semantics = [#tpu.dimension_semantics<parallel>], iteration_bounds = array<i64: 1>, scalar_prefetch = 0 : i64, scratch_operands = 0 : i64, tpu.core_type = #tpu.core_type<tc>, window_params = [{transform_indices = @transform_0, window_bounds = array<i64: 16, 128>}, {transform_indices = @transform_1, window_bounds = array<i64: 16, 128>}, {transform_indices = @transform_2, window_bounds = array<i64: 1, 1>}]} {
    %c0 = arith.constant 0 : index
    %c0_0 = arith.constant 0 : index
    %0 = vector.load %arg1[%c0, %c0_0] : memref<16x128xf32, #tpu.memory_space<vmem>>, vector<16x128xf32>
    %c0_1 = arith.constant 0 : index
    %c0_2 = arith.constant 0 : index
    %1 = vector.load %arg2[%c0_1, %c0_2] : memref<16x128xf32, #tpu.memory_space<vmem>>, vector<16x128xf32>
    %2 = arith.subf %0, %1 : vector<16x128xf32>
    %3 = math.absf %2 : vector<16x128xf32>
    %4 = vector.shape_cast %3 : vector<16x128xf32> to vector<1x16x128xf32>
    %cst = arith.constant dense<0.000000e+00> : vector<1xf32>
    %5 = vector.multi_reduction <add>, %4, %cst [1, 2] : vector<1x16x128xf32> to vector<1xf32>
    %6 = vector.shape_cast %5 : vector<1xf32> to vector<1x1x1xf32>
    %7 = vector.extract %6[0, 0, 0] : f32 from vector<1x1x1xf32>
    %c0_3 = arith.constant 0 : index
    %c0_4 = arith.constant 0 : index
    %8 = memref.load %arg3[%c0_3, %c0_4] : memref<1x1xf32, #tpu.memory_space<smem>>
    memref.store %7, %arg3[%c0_3, %c0_4] : memref<1x1xf32, #tpu.memory_space<smem>>
    return
  }
  func.func @transform_0(%arg0: i32) -> (i32, i32) {
    %c0_i32 = arith.constant 0 : i32
    %c0_i32_0 = arith.constant 0 : i32
    return %arg0, %c0_i32 : i32, i32
  }
  func.func @transform_1(%arg0: i32) -> (i32, i32) {
    %c0_i32 = arith.constant 0 : i32
    %c0_i32_0 = arith.constant 0 : i32
    return %arg0, %c0_i32 : i32, i32
  }
  func.func @transform_2(%arg0: i32) -> (i32, i32) {
    %c0_i32 = arith.constant 0 : i32
    %c0_i32_0 = arith.constant 0 : i32
    return %arg0, %c0_i32 : i32, i32
  }
}

</mosaic_0001>

<llo_original>
// kernel: tpu_custom_call.1
$region0: #{tpu_custom_call.1}
  #allocation0 [shape = 'u32[]', space=smem, size = 0x4, offset = 0x4, fixed_abs, tag = 'smem constant byte address 0x4 - core index']
  #allocation1 [shape = 'u32[144,128]{1,0:T(1,128)}', space=vmem, size = 0x12000, scoped, tag = 'internal scratch']
  %s0 = inlined_call_operand.hbm [shape: f32[16,128], index: 0, kind: input, shape index: {}]
  %s1 = inlined_call_operand.hbm [shape: f32[16,128], index: 1, kind: input, shape index: {}]
  %s2 = inlined_call_operand.hbm [shape: f32[1,1], index: 2, kind: output, shape index: {}]
  %s3 = sld [smem:[#allocation0]]
  $region26: #{tpu_custom_call.1} parent=0
    _
  %s5 = ssub.s32 1, %s3
  %s6 = scalar_select 0, %s5, %s3
  $region1: #{tpu_custom_call.1} parent=0
    #allocation2 [shape = 'u8[8192]{0}', space=vmem, size = 0x2000, scoped, tag = 'input window, operand 0, single buffered']
    #allocation3 [shape = 's32[1]{0}', space=sflag, size = 0x4, scoped, tag = 'scoped memory for tpu_custom_call.1']
    #allocation4 [shape = 's32[1]{0}', space=sflag, size = 0x4, scoped, tag = 'scoped memory for tpu_custom_call.1']
    #allocation5 [shape = 'u8[8192]{0}', space=vmem, size = 0x2000, scoped, tag = 'input window, operand 1, single buffered']
    #allocation6 [shape = 's32[1]{0}', space=sflag, size = 0x4, scoped, tag = 'scoped memory for tpu_custom_call.1']
    #allocation7 [shape = 'u8[512]{0}', space=smem, size = 0x200, scoped, tag = 'output window, operand 0, single buffered']
    %7 = vsyncpa [#allocation3], 0
    %8 = vsyncpa [#allocation6], 0
    %9 = vsyncpa [#allocation4], 0
    // Predicated region
    $region2: #{tpu_custom_call.1} parent=1 // pred_check
      _
    $region3: #{tpu_custom_call.1} parent=1 // pred_check_branch
      %11 = sbr.rel (0) target = $region5
    $region4: #{tpu_custom_call.1} parent=1 // pred_region
      %s13 = ssub.s32 256, 256
      %14 = vsyncadd [#allocation3], %s13
      %s15 = sshll.u32 [#allocation2], 4
      %s16 = int_to_ptr.vmem [resolvable:$true] %s15
      %21 = dma.hbm_to_vmem [thread:$0]  %s0, 256, %s16, [#allocation3], 128, 128, 8
    $region5: #{tpu_custom_call.1} parent=1 // pred_fallthru
      _
    // Predicated region
    $region6: #{tpu_custom_call.1} parent=1 // pred_check
      _
    $region7: #{tpu_custom_call.1} parent=1 // pred_check_branch
      %23 = sbr.rel (0) target = $region9
    $region8: #{tpu_custom_call.1} parent=1 // pred_region
      %s25 = ssub.s32 256, 256
      %26 = vsyncadd [#allocation6], %s25
      %s27 = sshll.u32 [#allocation5], 4
      %s28 = int_to_ptr.vmem [resolvable:$true] %s27
      %33 = dma.hbm_to_vmem [thread:$0]  %s1, 256, %s28, [#allocation6], 128, 128, 8
    $region9: #{tpu_custom_call.1} parent=1 // pred_fallthru
      _
    // Predicated region
    $region10: #{tpu_custom_call.1} parent=1 // pred_check
      _
    $region11: #{tpu_custom_call.1} parent=1 // pred_check_branch
      %35 = sbr.rel (0) target = $region13
    $region12: #{tpu_custom_call.1} parent=1 // pred_region
      %36 = dma.done [#allocation3], 256
    $region13: #{tpu_custom_call.1} parent=1 // pred_fallthru
      _
    // Predicated region
    $region14: #{tpu_custom_call.1} parent=1 // pred_check
      _
    $region15: #{tpu_custom_call.1} parent=1 // pred_check_branch
      %38 = sbr.rel (0) target = $region17
    $region16: #{tpu_custom_call.1} parent=1 // pred_region
      %39 = dma.done [#allocation6], 256
    $region17: #{tpu_custom_call.1} parent=1 // pred_fallthru
      _
    %v40 = vld [vmem:[#allocation2] sm:$0xff]
    %v41 = vld [vmem:[#allocation2 + $0x8] sm:$0xff]
    %v42 = vld [vmem:[#allocation5] sm:$0xff]
    %v43 = vld [vmem:[#allocation5 + $0x8] sm:$0xff]
    %v44 = vsub.f32 %v40, %v42
    %v45 = vsub.f32 %v41, %v43
    %v46 = vand.u32 2147483647, %v44
    %v47 = vand.u32 2147483647, %v45
    %v48 = vadd.f32 %v46, %v47
    %49 = vadd.xlane.f32.xlu0 %v48
    %v50 = vpop.xlane.xlu0 %49
    %v51 = vrot.slane %v50, 4
    %v52 = vadd.f32 %v50, %v51
    %v53 = vrot.slane %v52, 2
    %v54 = vadd.f32 %v52, %v53
    %v55 = vrot.slane %v54, 1
    %v56 = vadd.f32 %v54, %v55
    %s57 = vtos %v56
    %s58 = scalar_lea.smem [#allocation7], 0
    %59 = sst [smem:[%s58]] %s57
    // Predicated region
    $region18: #{tpu_custom_call.1} parent=1 // pred_check
      _
    $region19: #{tpu_custom_call.1} parent=1 // pred_check_branch
      %61 = sbr.rel (0) target = $region21
    $region20: #{tpu_custom_call.1} parent=1 // pred_region
      %s63 = ssub.s32 16, 16
      %64 = vsyncadd [#allocation4], %s63
      %67 = dma.smem_to_hbm [#allocation7], 16, %s2, [#allocation4]
    $region21: #{tpu_custom_call.1} parent=1 // pred_fallthru
      _
    // Predicated region
    $region22: #{tpu_custom_call.1} parent=1 // pred_check
      _
    $region23: #{tpu_custom_call.1} parent=1 // pred_check_branch
      %69 = sbr.rel (0) target = $region25
    $region24: #{tpu_custom_call.1} parent=1 // pred_region
      %70 = dma.done [#allocation4], 16
    $region25: #{tpu_custom_call.1} parent=1 // pred_fallthru
      _
    %71 = sfence
    %72 = vsyncpa [#allocation3], 1
    %73 = vsyncpa [#allocation6], 1
    %74 = vsyncpa [#allocation4], 1

</llo_original>
